<compile_context>
chip_gen: v5e
topology: v5e:2x2
jax: 0.10.0
libtpu: 0.0.40
codegen_flags: <defaults>
</compile_context>

<pallas_src>
import functools

import jax
import jax.numpy as jnp
from jax.experimental import pallas as pl
from jax.experimental.pallas import tpu as pltpu

LOG_STD_MIN = -20.0
LOG_STD_MAX = 2.0


def _sac_policy_kernel(
    action_dim,                     # static python int (bound via partial)
    state_ref,
    w1_ref, b1_ref,
    w2_ref, b2_ref,
    wh_ref, bh_ref,                 # fused [mean | log_std | zero-pad] head
    out_ref,                        # (TM, HEAD_PAD) lane-dense slab, f32
):
    """2 hidden Linear+ReLU layers + fused (mean, log_std) head, one grid step."""
    x = state_ref[...].astype(jnp.bfloat16)

    # hidden layer 1: Linear (bf16 MXU, f32 acc) + bias + ReLU in f32
    h = jnp.dot(x, w1_ref[...], preferred_element_type=jnp.float32) + b1_ref[...]
    h = jnp.maximum(h, 0.0)

    # hidden layer 2
    h = jnp.dot(h.astype(jnp.bfloat16), w2_ref[...],
                preferred_element_type=jnp.float32) + b2_ref[...]
    h = jnp.maximum(h, 0.0)

    # fused head: cols [0, A) = mean, [A, 2A) = log_std, rest zero-pad
    head = jnp.dot(h.astype(jnp.bfloat16), wh_ref[...],
                   preferred_element_type=jnp.float32) + bh_ref[...]

    # clamp only the log_std lanes (VPU mask, stays lane-dense)
    col = jax.lax.broadcasted_iota(jnp.int32, head.shape, 1)
    is_log_std = (col >= action_dim) & (col < 2 * action_dim)
    out_ref[...] = jnp.where(
        is_log_std, jnp.clip(head, LOG_STD_MIN, LOG_STD_MAX), head
    )


def _round_up(x, m):
    return int(pl.cdiv(x, m)) * m


def prepare_params(params):
    """One-time, off-hot-path param prep: fuse heads, zero-pad lane dims,
    cast MXU operands to bf16.  Cache the result alongside the params."""
    state_dim, hidden_dim = params["w1"].shape
    action_dim = params["wm"].shape[1]
    hp = max(128, _round_up(hidden_dim, 128))
    head_pad = max(128, _round_up(2 * action_dim, 128))

    w1 = jnp.zeros((state_dim, hp), jnp.float32).at[:, :hidden_dim].set(params["w1"])
    b1 = jnp.zeros((1, hp), jnp.float32).at[:, :hidden_dim].set(params["b1"])
    w2 = jnp.zeros((hp, hp), jnp.float32).at[:hidden_dim, :hidden_dim].set(params["w2"])
    b2 = jnp.zeros((1, hp), jnp.float32).at[:, :hidden_dim].set(params["b2"])

    wh = jnp.zeros((hp, head_pad), jnp.float32)
    wh = wh.at[:hidden_dim, :action_dim].set(params["wm"])
    wh = wh.at[:hidden_dim, action_dim:2 * action_dim].set(params["ws"])
    bh = jnp.zeros((1, head_pad), jnp.float32)
    bh = bh.at[:, :action_dim].set(params["bm"])
    bh = bh.at[:, action_dim:2 * action_dim].set(params["bs"])

    kparams = {
        "w1": w1.astype(jnp.bfloat16), "b1": b1,
        "w2": w2.astype(jnp.bfloat16), "b2": b2,
        "wh": wh.astype(jnp.bfloat16), "bh": bh,
    }
    return kparams, action_dim


def _choose_tm(rows):
    """Batch tile: multiple of 8, up to 512 rows, and >= 2 grid steps when the
    batch allows so ("parallel",) can shard across both TensorCores on v7x."""
    if rows <= 16:
        return 8
    return min(512, _round_up(rows, 16) // 16 * 8)


@functools.partial(jax.jit, static_argnames=("action_dim",))
def sac_policy_forward(state, kparams, *, action_dim):
    """Pallas-backed equivalent of SACPolicy.forward (n_layers=2)."""
    b, state_dim = state.shape
    hp = kparams["w1"].shape[1]
    head_pad = kparams["wh"].shape[1]

    # very small batches: pad up to one 8-row tile (cheap); otherwise let the
    # ragged last tile be masked by Pallas (no full-tensor jnp.pad).
    rows = b
    if b < 8:
        state = jnp.pad(state, ((0, 8 - b), (0, 0)))
        rows = 8

    tm = _choose_tm(rows)
    grid = (int(pl.cdiv(rows, tm)),)

    flops = 2 * rows * (state_dim * hp + hp * hp + hp * head_pad)
    bytes_accessed = (
        4 * rows * state_dim                                   # state (f32)
        + 2 * (state_dim * hp + hp * hp + hp * head_pad)       # bf16 weights
        + 4 * (2 * hp + head_pad)                              # f32 biases
        + 4 * rows * head_pad                                  # f32 output
    )

    # raise the scoped VMEM limit only if resident weights + tiles need it
    weight_bytes = 2 * (state_dim * hp + hp * hp + hp * head_pad) + 4 * (2 * hp + head_pad)
    tile_bytes = 4 * tm * state_dim + 4 * tm * head_pad
    vmem_need = 2 * (weight_bytes + tile_bytes)                # default dbl-buffer
    cp_kwargs = dict(dimension_semantics=("parallel",))
    if vmem_need > 28 * 1024 * 1024:
        cp_kwargs["vmem_limit_bytes"] = int(min(vmem_need + (8 << 20), 120 << 20))

    # TODO(synk): on v7x with very large hidden_dim, single-buffer the resident
    # weight BlockSpecs (pipeline_mode=pl.Buffered(1)) to reclaim VMEM headroom.
    out = pl.pallas_call(
        functools.partial(_sac_policy_kernel, action_dim),
        out_shape=jax.ShapeDtypeStruct((rows, head_pad), jnp.float32),
        grid=grid,
        in_specs=[
            pl.BlockSpec((tm, state_dim), lambda i: (i, 0)),
            pl.BlockSpec((state_dim, hp), lambda i: (0, 0)),
            pl.BlockSpec((1, hp), lambda i: (0, 0)),
            pl.BlockSpec((hp, hp), lambda i: (0, 0)),
            pl.BlockSpec((1, hp), lambda i: (0, 0)),
            pl.BlockSpec((hp, head_pad), lambda i: (0, 0)),
            pl.BlockSpec((1, head_pad), lambda i: (0, 0)),
        ],
        out_specs=pl.BlockSpec((tm, head_pad), lambda i: (i, 0)),
        compiler_params=pltpu.CompilerParams(**cp_kwargs),
        cost_estimate=pl.CostEstimate(
            flops=flops, transcendentals=0, bytes_accessed=bytes_accessed
        ),
    )(
        state,
        kparams["w1"], kparams["b1"],
        kparams["w2"], kparams["b2"],
        kparams["wh"], kparams["bh"],
    )

    mean = out[:b, :action_dim]
    log_std = out[:b, action_dim:2 * action_dim]   # already clamped in-kernel
    return mean, log_std


def init_params(key, state_dim, action_dim, hidden_dim):
    """Deterministic synthetic init (PyTorch-Linear-style uniform fan-in)."""
    def linear(k, fan_in, fan_out):
        k1, k2 = jax.random.split(k)
        bound = 1.0 / jnp.sqrt(fan_in)
        w = jax.random.uniform(k1, (fan_in, fan_out), jnp.float32, -bound, bound)
        b = jax.random.uniform(k2, (1, fan_out), jnp.float32, -bound, bound)
        return w, b

    k1, k2, k3, k4 = jax.random.split(key, 4)
    w1, b1 = linear(k1, state_dim, hidden_dim)
    w2, b2 = linear(k2, hidden_dim, hidden_dim)
    wm, bm = linear(k3, hidden_dim, action_dim)
    ws, bs = linear(k4, hidden_dim, action_dim)
    return {
        "w1": w1, "b1": b1,
        "w2": w2, "b2": b2,
        "wm": wm, "bm": bm,
        "ws": ws, "bs": bs,
    }


def _reference_forward_f32(state, p):
    """Pure-JAX f32 reference matching the PyTorch semantics."""
    h = jnp.maximum(state @ p["w1"] + p["b1"], 0.0)
    h = jnp.maximum(h @ p["w2"] + p["b2"], 0.0)
    mean = h @ p["wm"] + p["bm"]
    log_std = jnp.clip(h @ p["ws"] + p["bs"], LOG_STD_MIN, LOG_STD_MAX)
    return mean, log_std


def _reference_forward_bf16(state, p):
    """Pure-JAX reference mirroring the kernel's bf16-operand / f32-acc path."""
    bf, f32 = jnp.bfloat16, jnp.float32
    h = jnp.dot(state.astype(bf), p["w1"].astype(bf), preferred_element_type=f32) + p["b1"]
    h = jnp.maximum(h, 0.0)
    h = jnp.dot(h.astype(bf), p["w2"].astype(bf), preferred_element_type=f32) + p["b2"]
    h = jnp.maximum(h, 0.0)
    mean = jnp.dot(h.astype(bf), p["wm"].astype(bf), preferred_element_type=f32) + p["bm"]
    log_std = jnp.dot(h.astype(bf), p["ws"].astype(bf), preferred_element_type=f32) + p["bs"]
    return mean, jnp.clip(log_std, LOG_STD_MIN, LOG_STD_MAX)


if __name__ == "__main__":
    # TODO(synk): SACPolicy.sample() uses torch.distributions.Normal.rsample();
    # only the deterministic forward() (mean, log_std) is implemented in-kernel.
    state_dim = 16
    action_dim = 4
    hidden_dim = 32

    key = jax.random.PRNGKey(0)
    k_state, k_params = jax.random.split(key)
    params = init_params(k_params, state_dim, action_dim, hidden_dim)
    kparams, a_dim = prepare_params(params)        # one-time, off the hot path

    ok = True
    for batch in (8, 20, 4):                       # even, ragged, tiny-batch paths
        state = jax.random.normal(k_state, (batch, state_dim), jnp.float32)
        mean, log_std = sac_policy_forward(state, kparams, action_dim=a_dim)
        jax.block_until_ready((mean, log_std))

        ref_m32, ref_s32 = _reference_forward_f32(state, params)
        ref_mbf, ref_sbf = _reference_forward_bf16(state, params)

        assert mean.shape == (batch, action_dim)
        assert log_std.shape == (batch, action_dim)
        # tight check vs bf16-operand reference (same arithmetic path)
        ok &= bool(jnp.allclose(mean, ref_mbf, atol=2e-3, rtol=2e-3))
        ok &= bool(jnp.allclose(log_std, ref_sbf, atol=2e-3, rtol=2e-3))
        # loose check vs the f32 PyTorch-equivalent reference (bf16 rounding)
        ok &= bool(jnp.allclose(mean, ref_m32, atol=5e-2, rtol=5e-2))
        ok &= bool(jnp.allclose(log_std, ref_s32, atol=5e-2, rtol=5e-2))
        ok &= bool(jnp.all(log_std >= LOG_STD_MIN)) and bool(jnp.all(log_std <= LOG_STD_MAX))

    assert ok, "mismatch vs reference"
    print("KERNEL_OK")
</pallas_src>

<mosaic_0001>
module attributes {stable_mosaic.version = 11 : i64} {
  func.func @_sac_policy_kernel(%arg0: i32, %arg1: memref<8x16xf32, #tpu.memory_space<vmem>>, %arg2: memref<16x128xbf16, #tpu.memory_space<vmem>>, %arg3: memref<1x128xf32, #tpu.memory_space<vmem>>, %arg4: memref<128x128xbf16, #tpu.memory_space<vmem>>, %arg5: memref<1x128xf32, #tpu.memory_space<vmem>>, %arg6: memref<128x128xbf16, #tpu.memory_space<vmem>>, %arg7: memref<1x128xf32, #tpu.memory_space<vmem>>, %arg8: memref<8x128xf32, #tpu.memory_space<vmem>>) attributes {dimension_semantics = [#tpu.dimension_semantics<parallel>], iteration_bounds = array<i64: 1>, scalar_prefetch = 0 : i64, scratch_operands = 0 : i64, tpu.core_type = #tpu.core_type<tc>, window_params = [{transform_indices = @transform_0, window_bounds = array<i64: 8, 16>}, {pipeline_mode = #tpu.pipeline_mode<synchronous>, transform_indices = @transform_1, window_bounds = array<i64: 16, 128>}, {pipeline_mode = #tpu.pipeline_mode<synchronous>, transform_indices = @transform_2, window_bounds = array<i64: 1, 128>}, {pipeline_mode = #tpu.pipeline_mode<synchronous>, transform_indices = @transform_3, window_bounds = array<i64: 128, 128>}, {pipeline_mode = #tpu.pipeline_mode<synchronous>, transform_indices = @transform_4, window_bounds = array<i64: 1, 128>}, {pipeline_mode = #tpu.pipeline_mode<synchronous>, transform_indices = @transform_5, window_bounds = array<i64: 128, 128>}, {pipeline_mode = #tpu.pipeline_mode<synchronous>, transform_indices = @transform_6, window_bounds = array<i64: 1, 128>}, {transform_indices = @transform_7, window_bounds = array<i64: 8, 128>}]} {
    %c0 = arith.constant 0 : index
    %c0_0 = arith.constant 0 : index
    %0 = vector.load %arg1[%c0, %c0_0] : memref<8x16xf32, #tpu.memory_space<vmem>>, vector<8x16xf32>
    %1 = arith.truncf %0 : vector<8x16xf32> to vector<8x16xbf16>
    %c0_1 = arith.constant 0 : index
    %c0_2 = arith.constant 0 : index
    %2 = vector.load %arg2[%c0_1, %c0_2] : memref<16x128xbf16, #tpu.memory_space<vmem>>, vector<16x128xbf16>
    %cst = arith.constant dense<0.000000e+00> : vector<8x128xf32>
    %3 = tpu.matmul %1, %2, %cst {dimension_numbers = #tpu.dot_dimension_numbers<[1], [0], [0], [1], [0, 0, 1, 1], [], []>} : vector<8x16xbf16>, vector<16x128xbf16>, vector<8x128xf32> -> vector<8x128xf32>
    %c0_3 = arith.constant 0 : index
    %c0_4 = arith.constant 0 : index
    %4 = vector.load %arg3[%c0_3, %c0_4] : memref<1x128xf32, #tpu.memory_space<vmem>>, vector<1x128xf32>
    %5 = vector.broadcast %4 : vector<1x128xf32> to vector<8x128xf32>
    %6 = arith.addf %3, %5 : vector<8x128xf32>
    %cst_5 = arith.constant 0.000000e+00 : f32
    %7 = vector.broadcast %cst_5 : f32 to vector<8x128xf32>
    %8 = arith.maximumf %6, %7 : vector<8x128xf32>
    %9 = arith.truncf %8 : vector<8x128xf32> to vector<8x128xbf16>
    %c0_6 = arith.constant 0 : index
    %c0_7 = arith.constant 0 : index
    %10 = vector.load %arg4[%c0_6, %c0_7] : memref<128x128xbf16, #tpu.memory_space<vmem>>, vector<128x128xbf16>
    %cst_8 = arith.constant dense<0.000000e+00> : vector<8x128xf32>
    %11 = tpu.matmul %9, %10, %cst_8 {dimension_numbers = #tpu.dot_dimension_numbers<[1], [0], [0], [1], [0, 0, 1, 1], [], []>} : vector<8x128xbf16>, vector<128x128xbf16>, vector<8x128xf32> -> vector<8x128xf32>
    %c0_9 = arith.constant 0 : index
    %c0_10 = arith.constant 0 : index
    %12 = vector.load %arg5[%c0_9, %c0_10] : memref<1x128xf32, #tpu.memory_space<vmem>>, vector<1x128xf32>
    %13 = vector.broadcast %12 : vector<1x128xf32> to vector<8x128xf32>
    %14 = arith.addf %11, %13 : vector<8x128xf32>
    %cst_11 = arith.constant 0.000000e+00 : f32
    %15 = vector.broadcast %cst_11 : f32 to vector<8x128xf32>
    %16 = arith.maximumf %14, %15 : vector<8x128xf32>
    %17 = arith.truncf %16 : vector<8x128xf32> to vector<8x128xbf16>
    %c0_12 = arith.constant 0 : index
    %c0_13 = arith.constant 0 : index
    %18 = vector.load %arg6[%c0_12, %c0_13] : memref<128x128xbf16, #tpu.memory_space<vmem>>, vector<128x128xbf16>
    %cst_14 = arith.constant dense<0.000000e+00> : vector<8x128xf32>
    %19 = tpu.matmul %17, %18, %cst_14 {dimension_numbers = #tpu.dot_dimension_numbers<[1], [0], [0], [1], [0, 0, 1, 1], [], []>} : vector<8x128xbf16>, vector<128x128xbf16>, vector<8x128xf32> -> vector<8x128xf32>
    %c0_15 = arith.constant 0 : index
    %c0_16 = arith.constant 0 : index
    %20 = vector.load %arg7[%c0_15, %c0_16] : memref<1x128xf32, #tpu.memory_space<vmem>>, vector<1x128xf32>
    %21 = vector.broadcast %20 : vector<1x128xf32> to vector<8x128xf32>
    %22 = arith.addf %19, %21 : vector<8x128xf32>
    %23 = tpu.iota {dimensions = array<i32: 1>} : vector<8x128xi32>
    %c4_i32 = arith.constant 4 : i32
    %24 = vector.broadcast %c4_i32 : i32 to vector<8x128xi32>
    %25 = arith.cmpi sge, %23, %24 : vector<8x128xi32>
    %c8_i32 = arith.constant 8 : i32
    %26 = vector.broadcast %c8_i32 : i32 to vector<8x128xi32>
    %27 = arith.cmpi slt, %23, %26 : vector<8x128xi32>
    %28 = arith.andi %25, %27 : vector<8x128xi1>
    %cst_17 = arith.constant -2.000000e+01 : f32
    %cst_18 = arith.constant 2.000000e+00 : f32
    %29 = vector.broadcast %cst_17 : f32 to vector<8x128xf32>
    %30 = arith.maximumf %29, %22 : vector<8x128xf32>
    %31 = vector.broadcast %cst_18 : f32 to vector<8x128xf32>
    %32 = arith.minimumf %31, %30 : vector<8x128xf32>
    %33 = arith.select %28, %32, %22 : vector<8x128xi1>, vector<8x128xf32>
    %c0_19 = arith.constant 0 : index
    %c0_20 = arith.constant 0 : index
    %34 = vector.load %arg8[%c0_19, %c0_20] : memref<8x128xf32, #tpu.memory_space<vmem>>, vector<8x128xf32>
    tpu.vector_store %arg8[%c0_19, %c0_20], %33 {strides = array<i32>} : memref<8x128xf32, #tpu.memory_space<vmem>>, vector<8x128xf32>,
    return
  }
  func.func @transform_0(%arg0: i32) -> (i32, i32) {
    %c0_i32 = arith.constant 0 : i32
    %c0_i32_0 = arith.constant 0 : i32
    return %arg0, %c0_i32 : i32, i32
  }
  func.func @transform_1(%arg0: i32) -> (i32, i32) {
    %c0_i32 = arith.constant 0 : i32
    %c0_i32_0 = arith.constant 0 : i32
    %c0_i32_1 = arith.constant 0 : i32
    return %c0_i32, %c0_i32_0 : i32, i32
  }
  func.func @transform_2(%arg0: i32) -> (i32, i32) {
    %c0_i32 = arith.constant 0 : i32
    %c0_i32_0 = arith.constant 0 : i32
    %c0_i32_1 = arith.constant 0 : i32
    return %c0_i32, %c0_i32_0 : i32, i32
  }
  func.func @transform_3(%arg0: i32) -> (i32, i32) {
    %c0_i32 = arith.constant 0 : i32
    %c0_i32_0 = arith.constant 0 : i32
    %c0_i32_1 = arith.constant 0 : i32
    return %c0_i32, %c0_i32_0 : i32, i32
  }
  func.func @transform_4(%arg0: i32) -> (i32, i32) {
    %c0_i32 = arith.constant 0 : i32
    %c0_i32_0 = arith.constant 0 : i32
    %c0_i32_1 = arith.constant 0 : i32
    return %c0_i32, %c0_i32_0 : i32, i32
  }
  func.func @transform_5(%arg0: i32) -> (i32, i32) {
    %c0_i32 = arith.constant 0 : i32
    %c0_i32_0 = arith.constant 0 : i32
    %c0_i32_1 = arith.constant 0 : i32
    return %c0_i32, %c0_i32_0 : i32, i32
  }
  func.func @transform_6(%arg0: i32) -> (i32, i32) {
    %c0_i32 = arith.constant 0 : i32
    %c0_i32_0 = arith.constant 0 : i32
    %c0_i32_1 = arith.constant 0 : i32
    return %c0_i32, %c0_i32_0 : i32, i32
  }
  func.func @transform_7(%arg0: i32) -> (i32, i32) {
    %c0_i32 = arith.constant 0 : i32
    %c0_i32_0 = arith.constant 0 : i32
    return %arg0, %c0_i32 : i32, i32
  }
}

</mosaic_0001>

<llo_original>
// kernel: sac_policy_forward.1
$region0: #{sac_policy_forward.1}
  #allocation0 [shape = 'u32[]', space=smem, size = 0x4, offset = 0x4, fixed_abs, tag = 'smem constant byte address 0x4 - core index']
  #allocation1 [shape = 'u32[72,128]{1,0:T(1,128)}', space=vmem, size = 0x9000, scoped, tag = 'internal scratch']
  %s0 = inlined_call_operand.hbm [shape: f32[8,16], index: 0, kind: input, shape index: {}]
  %s1 = inlined_call_operand.hbm [shape: bf16[16,128], index: 1, kind: input, shape index: {}]
  %s2 = inlined_call_operand.hbm [shape: f32[1,128], index: 2, kind: input, shape index: {}]
  %s3 = inlined_call_operand.hbm [shape: bf16[128,128], index: 3, kind: input, shape index: {}]
  %s4 = inlined_call_operand.vmem [shape: f32[1,128], index: 4, kind: input, shape index: {}]
  %s5 = inlined_call_operand.hbm [shape: bf16[128,128], index: 5, kind: input, shape index: {}]
  %s6 = inlined_call_operand.vmem [shape: f32[1,128], index: 6, kind: input, shape index: {}]
  %s7 = inlined_call_operand.vmem [shape: f32[8,128], index: 7, kind: output, shape index: {}]
  %s8 = sld [smem:[#allocation0]]
  $region58: #{sac_policy_forward.1} parent=0
    _
  %s10 = ssub.s32 1, %s8
  %s11 = scalar_select 0, %s10, %s8
  $region1: #{sac_policy_forward.1} parent=0
    #allocation2 [shape = 'u8[4096]{0}', space=vmem, size = 0x1000, scoped, tag = 'input window, operand 0, single buffered']
    #allocation3 [shape = 's32[1]{0}', space=sflag, size = 0x4, scoped, tag = 'scoped memory for sac_policy_forward.1']
    #allocation4 [shape = 'u8[4096]{0}', space=vmem, size = 0x1000, scoped, tag = 'input window, operand 1, single buffered']
    #allocation5 [shape = 's32[1]{0}', space=sflag, size = 0x4, scoped, tag = 'scoped memory for sac_policy_forward.1']
    #allocation6 [shape = 'u8[512]{0}', space=vmem, size = 0x400, scoped, tag = 'input window, operand 2, single buffered']
    #allocation7 [shape = 'u8[32768]{0}', space=vmem, size = 0x8000, scoped, tag = 'input window, operand 3, single buffered']
    #allocation8 [shape = 's32[1]{0}', space=sflag, size = 0x4, scoped, tag = 'scoped memory for sac_policy_forward.1']
    #allocation9 [shape = 'u8[32768]{0}', space=vmem, size = 0x8000, scoped, tag = 'input window, operand 5, single buffered']
    %12 = vsyncpa [#allocation3], 0
    %13 = vsyncpa [#allocation5], 0
    %14 = vsyncpa [#allocation8], 0
    // Predicated region
    $region2: #{sac_policy_forward.1} parent=1 // pred_check
      _
    $region3: #{sac_policy_forward.1} parent=1 // pred_check_branch
      %16 = sbr.rel (0) target = $region5
    $region4: #{sac_policy_forward.1} parent=1 // pred_region
      %18 = vsyncadd [#allocation3], 0
      %s20 = sshll.u32 %s0, 4
      %s21 = int_to_ptr.hbm [resolvable:$true] %s20
      %s22 = sshll.u32 [#allocation2], 4
      %s23 = int_to_ptr.vmem [resolvable:$true] %s22
      %25 = dma.hbm_to_vmem [thread:$0]  %s21, 128, %s23, [#allocation3]
    $region5: #{sac_policy_forward.1} parent=1 // pred_fallthru
      _
    // Predicated region
    $region6: #{sac_policy_forward.1} parent=1 // pred_check
      _
    $region7: #{sac_policy_forward.1} parent=1 // pred_check_branch
      %27 = sbr.rel (0) target = $region9
    $region8: #{sac_policy_forward.1} parent=1 // pred_region
      %29 = vsyncadd [#allocation5], 0
      %s30 = sshll.u32 %s1, 4
      %s31 = int_to_ptr.hbm [resolvable:$true] %s30
      %s32 = sshll.u32 [#allocation4], 4
      %s33 = int_to_ptr.vmem [resolvable:$true] %s32
      %38 = dma.hbm_to_vmem [thread:$0]  %s31, 128, %s33, [#allocation5], 64, 64, 4
    $region9: #{sac_policy_forward.1} parent=1 // pred_fallthru
      _
    // Predicated region
    $region10: #{sac_policy_forward.1} parent=1 // pred_check
      _
    $region11: #{sac_policy_forward.1} parent=1 // pred_check_branch
      %40 = sbr.rel (0) target = $region13
    $region12: #{sac_policy_forward.1} parent=1 // pred_region
      %42 = vsyncadd [#allocation5], 0
      %s44 = sshll.u32 %s2, 4
      %s45 = int_to_ptr.hbm [resolvable:$true] %s44
      %s46 = sshll.u32 [#allocation6], 4
      %s47 = int_to_ptr.vmem [resolvable:$true] %s46
      %49 = dma.hbm_to_vmem [thread:$0]  %s45, 16, %s47, [#allocation5]
    $region13: #{sac_policy_forward.1} parent=1 // pred_fallthru
      _
    // Predicated region
    $region14: #{sac_policy_forward.1} parent=1 // pred_check
      _
    $region15: #{sac_policy_forward.1} parent=1 // pred_check_branch
      %51 = sbr.rel (0) target = $region17
    $region16: #{sac_policy_forward.1} parent=1 // pred_region
      %53 = vsyncadd [#allocation8], 0
      %s54 = sshll.u32 %s3, 4
      %s55 = int_to_ptr.hbm [resolvable:$true] %s54
      %s56 = sshll.u32 [#allocation7], 4
      %s57 = int_to_ptr.vmem [resolvable:$true] %s56
      %62 = dma.hbm_to_vmem [thread:$0]  %s55, 1024, %s57, [#allocation8], 64, 64, 4
    $region17: #{sac_policy_forward.1} parent=1 // pred_fallthru
      _
    // Predicated region
    $region18: #{sac_policy_forward.1} parent=1 // pred_check
      _
    $region19: #{sac_policy_forward.1} parent=1 // pred_check_branch
      %64 = sbr.rel (0) target = $region21
    $region20: #{sac_policy_forward.1} parent=1 // pred_region
      _
    $region21: #{sac_policy_forward.1} parent=1 // pred_fallthru
      _
    // Predicated region
    $region22: #{sac_policy_forward.1} parent=1 // pred_check
      _
    $region23: #{sac_policy_forward.1} parent=1 // pred_check_branch
      %66 = sbr.rel (0) target = $region25
    $region24: #{sac_policy_forward.1} parent=1 // pred_region
      %68 = vsyncadd [#allocation8], 0
      %s69 = sshll.u32 %s5, 4
      %s70 = int_to_ptr.hbm [resolvable:$true] %s69
      %s71 = sshll.u32 [#allocation9], 4
      %s72 = int_to_ptr.vmem [resolvable:$true] %s71
      %77 = dma.hbm_to_vmem [thread:$0]  %s70, 1024, %s72, [#allocation8], 64, 64, 4
    $region25: #{sac_policy_forward.1} parent=1 // pred_fallthru
      _
    // Predicated region
    $region26: #{sac_policy_forward.1} parent=1 // pred_check
      _
    $region27: #{sac_policy_forward.1} parent=1 // pred_check_branch
      %79 = sbr.rel (0) target = $region29
    $region28: #{sac_policy_forward.1} parent=1 // pred_region
      _
    $region29: #{sac_policy_forward.1} parent=1 // pred_fallthru
      _
    // Predicated region
    $region30: #{sac_policy_forward.1} parent=1 // pred_check
      _
    $region31: #{sac_policy_forward.1} parent=1 // pred_check_branch
      %81 = sbr.rel (0) target = $region33
    $region32: #{sac_policy_forward.1} parent=1 // pred_region
      %83 = dma.done [#allocation3], 128
    $region33: #{sac_policy_forward.1} parent=1 // pred_fallthru
      _
    // Predicated region
    $region34: #{sac_policy_forward.1} parent=1 // pred_check
      _
    $region35: #{sac_policy_forward.1} parent=1 // pred_check_branch
      %85 = sbr.rel (0) target = $region37
    $region36: #{sac_policy_forward.1} parent=1 // pred_region
      %87 = dma.done [#allocation5], 128
    $region37: #{sac_policy_forward.1} parent=1 // pred_fallthru
      _
    // Predicated region
    $region38: #{sac_policy_forward.1} parent=1 // pred_check
      _
    $region39: #{sac_policy_forward.1} parent=1 // pred_check_branch
      %89 = sbr.rel (0) target = $region41
    $region40: #{sac_policy_forward.1} parent=1 // pred_region
      %91 = dma.done [#allocation5], 16
    $region41: #{sac_policy_forward.1} parent=1 // pred_fallthru
      _
    // Predicated region
    $region42: #{sac_policy_forward.1} parent=1 // pred_check
      _
    $region43: #{sac_policy_forward.1} parent=1 // pred_check_branch
      %93 = sbr.rel (0) target = $region45
    $region44: #{sac_policy_forward.1} parent=1 // pred_region
      %95 = dma.done [#allocation8], 1024
    $region45: #{sac_policy_forward.1} parent=1 // pred_fallthru
      _
    // Predicated region
    $region46: #{sac_policy_forward.1} parent=1 // pred_check
      _
    $region47: #{sac_policy_forward.1} parent=1 // pred_check_branch
      %97 = sbr.rel (0) target = $region49
    $region48: #{sac_policy_forward.1} parent=1 // pred_region
      %99 = dma.done [#allocation8], 1024
    $region49: #{sac_policy_forward.1} parent=1 // pred_fallthru
      _
    %v101 = vld [vmem:[#allocation2] sm:$0xff]
    %v102 = vpack.c.bf16 %v101, %v101
    %v103 = vld [vmem:[#allocation4] sm:$0xf]
    %v104 = vld [vmem:[#allocation4 + $0x4] sm:$0xf]
    %v105 = vld [vmem:[#allocation6] sm:$0x1]
    %v107 = vperm.slane %v105, 0
    %v111 = vunpack.c.l.b16 %v103
    %v112 = vunpack.c.l.b16 %v104
    %v113 = vpack.c.b16 %v112, %v111
    %vm115 = vcmask 130048
    %v117 = vsel %vm115, %v102, 0
    %119 = vmatpush.bf16.msra.mxu0 0
    %120 = vmatpush.bf16.msra.mxu0 0
    %121 = vmatpush.bf16.msra.mxu0 0
    %122 = vmatpush.bf16.msra.mxu0 0
    %123 = vmatpush.bf16.msra.mxu0 0
    %124 = vmatpush.bf16.msra.mxu0 0
    %125 = vmatpush.bf16.msra.mxu0 0
    %126 = vmatpush.bf16.msra.mxu0 %v113
    %127 = vmatmul.bf16.gmra.mxu0 %v117
    %v128 = vpop.f32.mrf.mxu0
    %v129 = vadd.f32 %v107, %v128
    %v130 = vpop.f32.mrf.mxu0
    %131 = vdwg.mxu0
    %v132 = vmax.f32 %v129, 0.0
    %v133 = vpack.c.bf16 %v132, %v132
    %v134 = vld [vmem:[#allocation7] sm:$0xf]
    %v135 = vld [vmem:[#allocation7 + $0x4] sm:$0xf]
    %v136 = vld [vmem:[#allocation7 + $0x8] sm:$0xf]
    %v137 = vld [vmem:[#allocation7 + $0xc] sm:$0xf]
    %v138 = vld [vmem:[#allocation7 + $0x10] sm:$0xf]
    %v139 = vld [vmem:[#allocation7 + $0x14] sm:$0xf]
    %v140 = vld [vmem:[#allocation7 + $0x18] sm:$0xf]
    %v141 = vld [vmem:[#allocation7 + $0x1c] sm:$0xf]
    %v142 = vld [vmem:[#allocation7 + $0x20] sm:$0xf]
    %v143 = vld [vmem:[#allocation7 + $0x24] sm:$0xf]
    %v144 = vld [vmem:[#allocation7 + $0x28] sm:$0xf]
    %v145 = vld [vmem:[#allocation7 + $0x2c] sm:$0xf]
    %v146 = vld [vmem:[#allocation7 + $0x30] sm:$0xf]
    %v147 = vld [vmem:[#allocation7 + $0x34] sm:$0xf]
    %v148 = vld [vmem:[#allocation7 + $0x38] sm:$0xf]
    %v149 = vld [vmem:[#allocation7 + $0x3c] sm:$0xf]
    %v150 = vld [vmem:[%s4] sm:$0x1]
    %v152 = vperm.slane %v150, 0
    %v170 = vunpack.c.l.b16 %v134
    %v171 = vunpack.c.l.b16 %v135
    %v172 = vunpack.c.l.b16 %v136
    %v173 = vunpack.c.l.b16 %v137
    %v174 = vunpack.c.l.b16 %v138
    %v175 = vunpack.c.l.b16 %v139
    %v176 = vunpack.c.l.b16 %v140
    %v177 = vunpack.c.l.b16 %v141
    %v178 = vunpack.c.l.b16 %v142
    %v179 = vunpack.c.l.b16 %v143
    %v180 = vunpack.c.l.b16 %v144
    %v181 = vunpack.c.l.b16 %v145
    %v182 = vunpack.c.l.b16 %v146
    %v183 = vunpack.c.l.b16 %v147
    %v184 = vunpack.c.l.b16 %v148
    %v185 = vunpack.c.l.b16 %v149
    %v186 = vpack.c.b16 %v171, %v170
    %v187 = vpack.c.b16 %v173, %v172
    %v188 = vpack.c.b16 %v175, %v174
    %v189 = vpack.c.b16 %v177, %v176
    %v190 = vpack.c.b16 %v179, %v178
    %v191 = vpack.c.b16 %v181, %v180
    %v192 = vpack.c.b16 %v183, %v182
    %v193 = vpack.c.b16 %v185, %v184
    %202 = vmatpush.bf16.msra.mxu0 %v193
    %203 = vmatpush.bf16.msra.mxu0 %v192
    %204 = vmatpush.bf16.msra.mxu0 %v191
    %205 = vmatpush.bf16.msra.mxu0 %v190
    %206 = vmatpush.bf16.msra.mxu0 %v189
    %207 = vmatpush.bf16.msra.mxu0 %v188
    %208 = vmatpush.bf16.msra.mxu0 %v187
    %209 = vmatpush.bf16.msra.mxu0 %v186
    %210 = vmatmul.bf16.gmra.mxu0 %v133
    %v211 = vpop.f32.mrf.mxu0
    %v212 = vadd.f32 %v152, %v211
    %v213 = vpop.f32.mrf.mxu0
    %214 = vdwg.mxu0
    %v215 = vmax.f32 %v212, 0.0
    %v216 = vpack.c.bf16 %v215, %v215
    %v217 = vld [vmem:[#allocation9] sm:$0xf]
    %v218 = vld [vmem:[#allocation9 + $0x4] sm:$0xf]
    %v219 = vld [vmem:[#allocation9 + $0x8] sm:$0xf]
    %v220 = vld [vmem:[#allocation9 + $0xc] sm:$0xf]
    %v221 = vld [vmem:[#allocation9 + $0x10] sm:$0xf]
    %v222 = vld [vmem:[#allocation9 + $0x14] sm:$0xf]
    %v223 = vld [vmem:[#allocation9 + $0x18] sm:$0xf]
    %v224 = vld [vmem:[#allocation9 + $0x1c] sm:$0xf]
    %v225 = vld [vmem:[#allocation9 + $0x20] sm:$0xf]
    %v226 = vld [vmem:[#allocation9 + $0x24] sm:$0xf]
    %v227 = vld [vmem:[#allocation9 + $0x28] sm:$0xf]
    %v228 = vld [vmem:[#allocation9 + $0x2c] sm:$0xf]
    %v229 = vld [vmem:[#allocation9 + $0x30] sm:$0xf]
    %v230 = vld [vmem:[#allocation9 + $0x34] sm:$0xf]
    %v231 = vld [vmem:[#allocation9 + $0x38] sm:$0xf]
    %v232 = vld [vmem:[#allocation9 + $0x3c] sm:$0xf]
    %v233 = vld [vmem:[%s6] sm:$0x1]
    %v235 = vperm.slane %v233, 0
    %v253 = vunpack.c.l.b16 %v217
    %v254 = vunpack.c.l.b16 %v218
    %v255 = vunpack.c.l.b16 %v219
    %v256 = vunpack.c.l.b16 %v220
    %v257 = vunpack.c.l.b16 %v221
    %v258 = vunpack.c.l.b16 %v222
    %v259 = vunpack.c.l.b16 %v223
    %v260 = vunpack.c.l.b16 %v224
    %v261 = vunpack.c.l.b16 %v225
    %v262 = vunpack.c.l.b16 %v226
    %v263 = vunpack.c.l.b16 %v227
    %v264 = vunpack.c.l.b16 %v228
    %v265 = vunpack.c.l.b16 %v229
    %v266 = vunpack.c.l.b16 %v230
    %v267 = vunpack.c.l.b16 %v231
    %v268 = vunpack.c.l.b16 %v232
    %v269 = vpack.c.b16 %v254, %v253
    %v270 = vpack.c.b16 %v256, %v255
    %v271 = vpack.c.b16 %v258, %v257
    %v272 = vpack.c.b16 %v260, %v259
    %v273 = vpack.c.b16 %v262, %v261
    %v274 = vpack.c.b16 %v264, %v263
    %v275 = vpack.c.b16 %v266, %v265
    %v276 = vpack.c.b16 %v268, %v267
    %285 = vmatpush.bf16.msra.mxu0 %v276
    %286 = vmatpush.bf16.msra.mxu0 %v275
    %287 = vmatpush.bf16.msra.mxu0 %v274
    %288 = vmatpush.bf16.msra.mxu0 %v273
    %289 = vmatpush.bf16.msra.mxu0 %v272
    %290 = vmatpush.bf16.msra.mxu0 %v271
    %291 = vmatpush.bf16.msra.mxu0 %v270
    %292 = vmatpush.bf16.msra.mxu0 %v269
    %293 = vmatmul.bf16.gmra.mxu0 %v216
    %v294 = vpop.f32.mrf.mxu0
    %v295 = vadd.f32 %v235, %v294
    %v296 = vpop.f32.mrf.mxu0
    %297 = vdwg.mxu0
    %v298 = vlaneseq
    %v299 = vand.u32 %v298, 127
    %vm300 = vcmp.ge.s32.totalorder %v299, 4
    %vm301 = vcmp.lt.s32.totalorder %v299, 8
    %vm302 = vmand %vm300, %vm301
    %v303 = vmax.f32 %v295, -20.0
    %v304 = vmin.f32 %v303, 2.0
    %v305 = vsel %vm302, %v304, %v295
    %306 = vst [vmem:[%s7] sm:$0xff] %v305
    // Predicated region
    $region50: #{sac_policy_forward.1} parent=1 // pred_check
      _
    $region51: #{sac_policy_forward.1} parent=1 // pred_check_branch
      %308 = sbr.rel (0) target = $region53
    $region52: #{sac_policy_forward.1} parent=1 // pred_region
      _
    $region53: #{sac_policy_forward.1} parent=1 // pred_fallthru
      _
    // Predicated region
    $region54: #{sac_policy_forward.1} parent=1 // pred_check
      _
    $region55: #{sac_policy_forward.1} parent=1 // pred_check_branch
      %310 = sbr.rel (0) target = $region57
    $region56: #{sac_policy_forward.1} parent=1 // pred_region
      _
    $region57: #{sac_policy_forward.1} parent=1 // pred_fallthru
      _
    %311 = vsyncpa [#allocation3], 1
    %312 = vsyncpa [#allocation5], 1
    %313 = vsyncpa [#allocation8], 1

</llo_original>
